<compile_context>
chip_gen: v7x
topology: tpu7x:2x2x1
jax: 0.10.0
libtpu: 0.0.40
codegen_flags: <defaults>
</compile_context>

<pallas_src>
import jax
import jax.numpy as jnp
from jax.experimental import pallas as pl
from jax.experimental.pallas import tpu as pltpu

_CHUNK = 256          # rows processed per inner sub-chunk
_MAX_TM = 2048        # max batch tile (double-buffered x tile stays tiny)


def mlp_kernel(x_ref, w1_ref, b1_ref, w2_ref, b2_ref, w3_ref, b3_ref, o_ref):
    tm = x_ref.shape[0]
    chunk = min(_CHUNK, tm)       # static
    n_chunks = tm // chunk        # wrapper guarantees tm % chunk == 0

    # Weights/biases are small (<~21 KiB total) and VMEM-resident; load once.
    w1 = w1_ref[...]              # (input_dim, hidden)
    b1 = b1_ref[...]              # (1, hidden)
    w2 = w2_ref[...]              # (hidden, hidden)
    b2 = b2_ref[...]              # (1, hidden)
    w3 = w3_ref[...]              # (1, hidden)  -- fc3 weight as lane-dense row
    b3 = b3_ref[...]              # (1, 1)

    # Fully unrolled sub-chunk loop: static trip count, static (aligned) slice
    # starts; per-chunk h1/h2 intermediates stay ~<40 vregs so nothing spills.
    for c in range(n_chunks):
        r0 = c * chunk
        xc = x_ref[r0:r0 + chunk, :]                                  # (chunk, in)
        h1 = jnp.maximum(
            jnp.dot(xc, w1, preferred_element_type=jnp.float32) + b1, 0.0)
        h2 = jnp.maximum(
            jnp.dot(h1, w2, preferred_element_type=jnp.float32) + b2, 0.0)
        # fc3 (out_features == 1): contract the last dims of (1,H) and
        # (chunk,H) so the result is a lane-dense (1, chunk) row -> full-lane
        # stores, instead of a (chunk, 1) column lowering to masked stores.
        y = jax.lax.dot_general(
            w3, h2,
            dimension_numbers=(((1,), (1,)), ((), ())),
            preferred_element_type=jnp.float32) + b3                  # (1, chunk)
        o_ref[0, :, r0:r0 + chunk] = y


def _round_up(n, m):
    return (n + m - 1) // m * m


def _choose_tm(b):
    if b <= _CHUNK:
        return max(_round_up(b, 8), 8)
    return min(_MAX_TM, _round_up(b, _CHUNK))


def neural_kernel_regression(x, w1, b1, w2, b2, w3, b3, *, tm=None):
    """3-layer MLP forward. x: (B, input_dim) f32 -> (B, 1) f32.

    w1: (input_dim, hidden), w2: (hidden, hidden), w3: (hidden, 1)  (transposed
    vs. PyTorch); b1/b2: (1, hidden); b3: (1, 1).
    """
    B, in_dim = x.shape
    hidden = w1.shape[1]
    w3_row = w3.reshape(1, hidden)      # (hidden, 1) -> lane-dense (1, hidden)
    b3 = b3.reshape(1, 1)

    if tm is None:
        tm = _choose_tm(B)
    b_pad = _round_up(B, tm)
    if b_pad != B:
        x = jnp.pad(x, ((0, b_pad - B), (0, 0)))
    n_blocks = b_pad // tm

    const2 = lambda i: (0, 0)
    out = pl.pallas_call(
        mlp_kernel,
        out_shape=jax.ShapeDtypeStruct((n_blocks, 1, tm), jnp.float32),
        grid=(n_blocks,),
        in_specs=[
            # x: one (tm, in_dim) tile per grid step (double-buffered pipeline).
            pl.BlockSpec((tm, in_dim), lambda i: (i, 0)),
            # Weights/biases: constant index maps -> block reused every step,
            # stays resident in VMEM (no per-step re-DMA).
            pl.BlockSpec((in_dim, hidden), const2),
            pl.BlockSpec((1, hidden), const2),
            pl.BlockSpec((hidden, hidden), const2),
            pl.BlockSpec((1, hidden), const2),
            pl.BlockSpec((1, hidden), const2),
            pl.BlockSpec((1, 1), const2),
        ],
        # Lane-dense output: one (1, tm) row per batch tile.
        out_specs=pl.BlockSpec((1, 1, tm), lambda i: (i, 0, 0)),
        compiler_params=pltpu.CompilerParams(
            dimension_semantics=("parallel",),        # megacore sharding on v7x
            vmem_limit_bytes=32 * 1024 * 1024,        # explicit; fits v5e/v6e/v7x
        ),
    )(x, w1, b1, w2, b2, w3_row, b3)

    return out.reshape(b_pad, 1)[:B]


def init_linear(key, fan_in, fan_out):
    """Match nn.Linear default init: U(-1/sqrt(fan_in), +1/sqrt(fan_in)).

    Returns W of shape (fan_in, fan_out) (transposed vs. PyTorch) and b of
    shape (1, fan_out).
    """
    kw, kb = jax.random.split(key)
    bound = 1.0 / jnp.sqrt(fan_in)
    w = jax.random.uniform(kw, (fan_in, fan_out), jnp.float32, -bound, bound)
    b = jax.random.uniform(kb, (1, fan_out), jnp.float32, -bound, bound)
    return w, b


if __name__ == "__main__":
    hidden_dim = 64
    input_dim = 16   # states_tensor.shape[1] in the reference script

    root = jax.random.PRNGKey(0)
    kx, k1, k2, k3 = jax.random.split(root, 4)

    w1, b1 = init_linear(k1, input_dim, hidden_dim)
    w2, b2 = init_linear(k2, hidden_dim, hidden_dim)
    w3, b3 = init_linear(k3, hidden_dim, 1)

    def ref_forward(x):
        h = jnp.maximum(x @ w1 + b1, 0.0)
        h = jnp.maximum(h @ w2 + b2, 0.0)
        return h @ w3 + b3

    # Case 1: small batch (original-script scale) -> single block, one chunk.
    x_small = jax.random.normal(kx, (64, input_dim), jnp.float32)
    out_small = jax.block_until_ready(
        neural_kernel_regression(x_small, w1, b1, w2, b2, w3, b3))
    assert out_small.shape == (64, 1)
    assert jnp.allclose(out_small, ref_forward(x_small), atol=1e-5, rtol=1e-5)

    # Case 2: small non-multiple batch with a forced tile -> exercises the
    # batch grid (2 blocks) and zero-padding while staying cheap to compile.
    x_mid = jax.random.normal(kx, (200, input_dim), jnp.float32)
    out_mid = jax.block_until_ready(
        neural_kernel_regression(x_mid, w1, b1, w2, b2, w3, b3, tm=128))
    assert out_mid.shape == (200, 1)
    assert jnp.allclose(out_mid, ref_forward(x_mid), atol=1e-5, rtol=1e-5)

    print("KERNEL_OK")
</pallas_src>

<mosaic_0001>
module attributes {stable_mosaic.version = 11 : i64} {
  func.func @mlp_kernel(%arg0: i32, %arg1: memref<64x16xf32, #tpu.memory_space<vmem>>, %arg2: memref<16x64xf32, #tpu.memory_space<vmem>>, %arg3: memref<1x64xf32, #tpu.memory_space<vmem>>, %arg4: memref<64x64xf32, #tpu.memory_space<vmem>>, %arg5: memref<1x64xf32, #tpu.memory_space<vmem>>, %arg6: memref<1x64xf32, #tpu.memory_space<vmem>>, %arg7: memref<1x1xf32, #tpu.memory_space<vmem>>, %arg8: memref<1x1x64xf32, #tpu.memory_space<vmem>>) attributes {dimension_semantics = [#tpu.dimension_semantics<parallel>], iteration_bounds = array<i64: 1>, scalar_prefetch = 0 : i64, scratch_operands = 0 : i64, tpu.core_type = #tpu.core_type<tc>, window_params = [{transform_indices = @transform_0, window_bounds = array<i64: 64, 16>}, {pipeline_mode = #tpu.pipeline_mode<synchronous>, transform_indices = @transform_1, window_bounds = array<i64: 16, 64>}, {pipeline_mode = #tpu.pipeline_mode<synchronous>, transform_indices = @transform_2, window_bounds = array<i64: 1, 64>}, {pipeline_mode = #tpu.pipeline_mode<synchronous>, transform_indices = @transform_3, window_bounds = array<i64: 64, 64>}, {pipeline_mode = #tpu.pipeline_mode<synchronous>, transform_indices = @transform_4, window_bounds = array<i64: 1, 64>}, {pipeline_mode = #tpu.pipeline_mode<synchronous>, transform_indices = @transform_5, window_bounds = array<i64: 1, 64>}, {pipeline_mode = #tpu.pipeline_mode<synchronous>, transform_indices = @transform_6, window_bounds = array<i64: 1, 1>}, {transform_indices = @transform_7, window_bounds = array<i64: 1, 1, 64>}]} {
    %c0 = arith.constant 0 : index
    %c0_0 = arith.constant 0 : index
    %0 = vector.load %arg2[%c0, %c0_0] : memref<16x64xf32, #tpu.memory_space<vmem>>, vector<16x64xf32>
    %c0_1 = arith.constant 0 : index
    %c0_2 = arith.constant 0 : index
    %1 = vector.load %arg3[%c0_1, %c0_2] : memref<1x64xf32, #tpu.memory_space<vmem>>, vector<1x64xf32>
    %c0_3 = arith.constant 0 : index
    %c0_4 = arith.constant 0 : index
    %2 = vector.load %arg4[%c0_3, %c0_4] : memref<64x64xf32, #tpu.memory_space<vmem>>, vector<64x64xf32>
    %c0_5 = arith.constant 0 : index
    %c0_6 = arith.constant 0 : index
    %3 = vector.load %arg5[%c0_5, %c0_6] : memref<1x64xf32, #tpu.memory_space<vmem>>, vector<1x64xf32>
    %c0_7 = arith.constant 0 : index
    %c0_8 = arith.constant 0 : index
    %4 = vector.load %arg6[%c0_7, %c0_8] : memref<1x64xf32, #tpu.memory_space<vmem>>, vector<1x64xf32>
    %c0_9 = arith.constant 0 : index
    %c0_10 = arith.constant 0 : index
    %5 = vector.load %arg7[%c0_9, %c0_10] : memref<1x1xf32, #tpu.memory_space<vmem>>, vector<1x1xf32>
    %c0_11 = arith.constant 0 : index
    %c0_12 = arith.constant 0 : index
    %6 = vector.load %arg1[%c0_11, %c0_12] : memref<64x16xf32, #tpu.memory_space<vmem>>, vector<64x16xf32>
    %cst = arith.constant dense<0.000000e+00> : vector<64x64xf32>
    %7 = tpu.matmul %6, %0, %cst {dimension_numbers = #tpu.dot_dimension_numbers<[1], [0], [0], [1], [0, 0, 1, 1], [], []>} : vector<64x16xf32>, vector<16x64xf32>, vector<64x64xf32> -> vector<64x64xf32>
    %8 = vector.broadcast %1 : vector<1x64xf32> to vector<64x64xf32>
    %9 = arith.addf %7, %8 : vector<64x64xf32>
    %cst_13 = arith.constant 0.000000e+00 : f32
    %10 = vector.broadcast %cst_13 : f32 to vector<64x64xf32>
    %11 = arith.maximumf %9, %10 : vector<64x64xf32>
    %cst_14 = arith.constant dense<0.000000e+00> : vector<64x64xf32>
    %12 = tpu.matmul %11, %2, %cst_14 {dimension_numbers = #tpu.dot_dimension_numbers<[1], [0], [0], [1], [0, 0, 1, 1], [], []>} : vector<64x64xf32>, vector<64x64xf32>, vector<64x64xf32> -> vector<64x64xf32>
    %13 = vector.broadcast %3 : vector<1x64xf32> to vector<64x64xf32>
    %14 = arith.addf %12, %13 : vector<64x64xf32>
    %cst_15 = arith.constant 0.000000e+00 : f32
    %15 = vector.broadcast %cst_15 : f32 to vector<64x64xf32>
    %16 = arith.maximumf %14, %15 : vector<64x64xf32>
    %cst_16 = arith.constant dense<0.000000e+00> : vector<1x64xf32>
    %17 = tpu.matmul %4, %16, %cst_16 {dimension_numbers = #tpu.dot_dimension_numbers<[1], [1], [0], [0], [0, 0, 1, 0], [], []>} : vector<1x64xf32>, vector<64x64xf32>, vector<1x64xf32> -> vector<1x64xf32>
    %18 = vector.broadcast %5 : vector<1x1xf32> to vector<1x64xf32>
    %19 = arith.addf %17, %18 : vector<1x64xf32>
    %c0_17 = arith.constant 0 : index
    %c0_18 = arith.constant 0 : index
    %c0_19 = arith.constant 0 : index
    %20 = vector.load %arg8[%c0_17, %c0_18, %c0_19] : memref<1x1x64xf32, #tpu.memory_space<vmem>>, vector<1x1x64xf32>
    %21 = vector.shape_cast %20 : vector<1x1x64xf32> to vector<1x64xf32>
    %22 = vector.shape_cast %19 : vector<1x64xf32> to vector<1x1x64xf32>
    tpu.vector_store %arg8[%c0_17, %c0_18, %c0_19], %22 {strides = array<i32>} : memref<1x1x64xf32, #tpu.memory_space<vmem>>, vector<1x1x64xf32>,
    return
  }
  func.func @transform_0(%arg0: i32) -> (i32, i32) {
    %c0_i32 = arith.constant 0 : i32
    %c0_i32_0 = arith.constant 0 : i32
    return %arg0, %c0_i32 : i32, i32
  }
  func.func @transform_1(%arg0: i32) -> (i32, i32) {
    %c0_i32 = arith.constant 0 : i32
    %c0_i32_0 = arith.constant 0 : i32
    %c0_i32_1 = arith.constant 0 : i32
    return %c0_i32, %c0_i32_0 : i32, i32
  }
  func.func @transform_2(%arg0: i32) -> (i32, i32) {
    %c0_i32 = arith.constant 0 : i32
    %c0_i32_0 = arith.constant 0 : i32
    %c0_i32_1 = arith.constant 0 : i32
    return %c0_i32, %c0_i32_0 : i32, i32
  }
  func.func @transform_3(%arg0: i32) -> (i32, i32) {
    %c0_i32 = arith.constant 0 : i32
    %c0_i32_0 = arith.constant 0 : i32
    %c0_i32_1 = arith.constant 0 : i32
    return %c0_i32, %c0_i32_0 : i32, i32
  }
  func.func @transform_4(%arg0: i32) -> (i32, i32) {
    %c0_i32 = arith.constant 0 : i32
    %c0_i32_0 = arith.constant 0 : i32
    %c0_i32_1 = arith.constant 0 : i32
    return %c0_i32, %c0_i32_0 : i32, i32
  }
  func.func @transform_5(%arg0: i32) -> (i32, i32) {
    %c0_i32 = arith.constant 0 : i32
    %c0_i32_0 = arith.constant 0 : i32
    %c0_i32_1 = arith.constant 0 : i32
    return %c0_i32, %c0_i32_0 : i32, i32
  }
  func.func @transform_6(%arg0: i32) -> (i32, i32) {
    %c0_i32 = arith.constant 0 : i32
    %c0_i32_0 = arith.constant 0 : i32
    %c0_i32_1 = arith.constant 0 : i32
    return %c0_i32, %c0_i32_0 : i32, i32
  }
  func.func @transform_7(%arg0: i32) -> (i32, i32, i32) {
    %c0_i32 = arith.constant 0 : i32
    %c0_i32_0 = arith.constant 0 : i32
    %c0_i32_1 = arith.constant 0 : i32
    return %arg0, %c0_i32, %c0_i32_0 : i32, i32, i32
  }
}

</mosaic_0001>

<llo_original>
// kernel: tpu_custom_call.1
$region0: #{tpu_custom_call.1}
  #allocation0 [shape = 'u32[]', space=smem, size = 0x4, offset = 0x4, fixed_abs, tag = 'smem constant byte address 0x4 - core index']
  #allocation1 [shape = 'u32[144,128]{1,0:T(1,128)}', space=vmem, size = 0x12000, scoped, tag = 'internal scratch']
  #allocation2 [shape = 'f32[1,1]{1,0:T(1,128)S(1)}', space=vmem, size = 0x200, scoped, tag = 'scoped memory for tpu_custom_call.1']
  %s0 = inlined_call_operand.vmem [shape: f32[64,16], index: 0, kind: input, shape index: {}]
  %s1 = inlined_call_operand.vmem [shape: f32[16,64], index: 1, kind: input, shape index: {}]
  %s2 = inlined_call_operand.vmem [shape: f32[1,64], index: 2, kind: input, shape index: {}]
  %s3 = inlined_call_operand.vmem [shape: f32[64,64], index: 3, kind: input, shape index: {}]
  %s4 = inlined_call_operand.vmem [shape: f32[1,64], index: 4, kind: input, shape index: {}]
  %s5 = inlined_call_operand.vmem [shape: f32[1,64], index: 5, kind: input, shape index: {}]
  %s6 = inlined_call_operand.<no memory space> [shape: f32[1,1], index: 6, kind: input, shape index: {}]
  %s7 = inlined_call_operand.hbm [shape: f32[1,1,64], index: 7, kind: output, shape index: {}]
  %s8 = sld [smem:[#allocation0]]
  $region38: #{tpu_custom_call.1} parent=0
    _
  %s10 = ssub.s32 1, %s8
  %s11 = scalar_select 0, %s10, %s8
  %v12 = vstv %s6
  %13 = vst [vmem:[#allocation2] sm:$0x1] %v12
  $region1: #{tpu_custom_call.1} parent=0
    #allocation3 [shape = 'u8[512]{0}', space=vmem, size = 0x400, scoped, tag = 'output window, operand 0, single buffered']
    #allocation4 [shape = 's32[1]{0}', space=sflag, size = 0x4, scoped, tag = 'scoped memory for tpu_custom_call.1']
    %14 = vsyncpa [#allocation4], 0
    // Predicated region
    $region2: #{tpu_custom_call.1} parent=1 // pred_check
      _
    $region3: #{tpu_custom_call.1} parent=1 // pred_check_branch
      %16 = sbr.rel (0) target = $region5
    $region4: #{tpu_custom_call.1} parent=1 // pred_region
      _
    $region5: #{tpu_custom_call.1} parent=1 // pred_fallthru
      _
    // Predicated region
    $region6: #{tpu_custom_call.1} parent=1 // pred_check
      _
    $region7: #{tpu_custom_call.1} parent=1 // pred_check_branch
      %18 = sbr.rel (0) target = $region9
    $region8: #{tpu_custom_call.1} parent=1 // pred_region
      _
    $region9: #{tpu_custom_call.1} parent=1 // pred_fallthru
      _
    // Predicated region
    $region10: #{tpu_custom_call.1} parent=1 // pred_check
      _
    $region11: #{tpu_custom_call.1} parent=1 // pred_check_branch
      %20 = sbr.rel (0) target = $region13
    $region12: #{tpu_custom_call.1} parent=1 // pred_region
      _
    $region13: #{tpu_custom_call.1} parent=1 // pred_fallthru
      _
    // Predicated region
    $region14: #{tpu_custom_call.1} parent=1 // pred_check
      _
    $region15: #{tpu_custom_call.1} parent=1 // pred_check_branch
      %22 = sbr.rel (0) target = $region17
    $region16: #{tpu_custom_call.1} parent=1 // pred_region
      _
    $region17: #{tpu_custom_call.1} parent=1 // pred_fallthru
      _
    // Predicated region
    $region18: #{tpu_custom_call.1} parent=1 // pred_check
      _
    $region19: #{tpu_custom_call.1} parent=1 // pred_check_branch
      %24 = sbr.rel (0) target = $region21
    $region20: #{tpu_custom_call.1} parent=1 // pred_region
      _
    $region21: #{tpu_custom_call.1} parent=1 // pred_fallthru
      _
    // Predicated region
    $region22: #{tpu_custom_call.1} parent=1 // pred_check
      _
    $region23: #{tpu_custom_call.1} parent=1 // pred_check_branch
      %26 = sbr.rel (0) target = $region25
    $region24: #{tpu_custom_call.1} parent=1 // pred_region
      _
    $region25: #{tpu_custom_call.1} parent=1 // pred_fallthru
      _
    // Predicated region
    $region26: #{tpu_custom_call.1} parent=1 // pred_check
      _
    $region27: #{tpu_custom_call.1} parent=1 // pred_check_branch
      %28 = sbr.rel (0) target = $region29
    $region28: #{tpu_custom_call.1} parent=1 // pred_region
      _
    $region29: #{tpu_custom_call.1} parent=1 // pred_fallthru
      _
    %v29 = vld [vmem:[%s1] sm:$0xff]
    %v30 = vld [vmem:[%s1 + $0x8] sm:$0xff]
    %v31 = vld [vmem:[%s2] sm:$0x1]
    %v32 = vld [vmem:[%s3] sm:$0xff]
    %v33 = vld [vmem:[%s3 + $0x8] sm:$0xff]
    %v34 = vld [vmem:[%s3 + $0x10] sm:$0xff]
    %v35 = vld [vmem:[%s3 + $0x18] sm:$0xff]
    %v36 = vld [vmem:[%s3 + $0x20] sm:$0xff]
    %v37 = vld [vmem:[%s3 + $0x28] sm:$0xff]
    %v38 = vld [vmem:[%s3 + $0x30] sm:$0xff]
    %v39 = vld [vmem:[%s3 + $0x38] sm:$0xff]
    %v40 = vld [vmem:[%s4] sm:$0x1]
    %v41 = vld [vmem:[%s5] sm:$0x1]
    %v42 = vld [vmem:[#allocation2] sm:$0x1]
    %v43 = vld [vmem:[%s0] sm:$0xff]
    %v44 = vld [vmem:[%s0 + $0x8] sm:$0xff]
    %v45 = vld [vmem:[%s0 + $0x10] sm:$0xff]
    %v46 = vld [vmem:[%s0 + $0x18] sm:$0xff]
    %v47 = vld [vmem:[%s0 + $0x20] sm:$0xff]
    %v48 = vld [vmem:[%s0 + $0x28] sm:$0xff]
    %v49 = vld [vmem:[%s0 + $0x30] sm:$0xff]
    %v50 = vld [vmem:[%s0 + $0x38] sm:$0xff]
    %v52 = vlaneseq
    %v53 = vshrl.u32 %v52, 7
    %v54 = vsub.s32 0, %v53
    %v55 = vrot.slane %v31, %v54
    %vm57 = vcmask 130048
    %v59 = vsel %vm57, %v43, 0
    %v62 = vsel %vm57, %v44, 0
    %v65 = vsel %vm57, %v45, 0
    %v68 = vsel %vm57, %v46, 0
    %v71 = vsel %vm57, %v47, 0
    %v74 = vsel %vm57, %v48, 0
    %v77 = vsel %vm57, %v49, 0
    %v80 = vsel %vm57, %v50, 0
    %82 = vmatprep.subr.mxu0 0.0
    %83 = vmatpush1.msra.mxu0 %v29
    %84 = vmatprep.subr.mxu0 0.0
    %85 = vmatpush1.msra.mxu0 %v30
    %86 = vmatprep.subr.mxu0 0.0
    %87 = vmatpush1.msra.mxu0 0.0
    %88 = vmatprep.subr.mxu0 0.0
    %89 = vmatpush1.msra.mxu0 0.0
    %90 = vmatprep.subr.mxu0 0.0
    %91 = vmatpush1.msra.mxu0 0.0
    %92 = vmatprep.subr.mxu0 0.0
    %93 = vmatpush1.msra.mxu0 0.0
    %94 = vmatprep.subr.mxu0 0.0
    %95 = vmatpush1.msra.mxu0 0.0
    %96 = vmatprep.subr.mxu0 0.0
    %97 = vmatpush1.msra.mxu0 0.0
    %98 = vmatprep.subr.mxu0 0.0
    %99 = vmatpush1.msra.mxu0 0.0
    %100 = vmatprep.subr.mxu0 0.0
    %101 = vmatpush1.msra.mxu0 0.0
    %102 = vmatprep.subr.mxu0 0.0
    %103 = vmatpush1.msra.mxu0 0.0
    %104 = vmatprep.subr.mxu0 0.0
    %105 = vmatpush1.msra.mxu0 0.0
    %106 = vmatprep.subr.mxu0 0.0
    %107 = vmatpush1.msra.mxu0 0.0
    %108 = vmatprep.subr.mxu0 0.0
    %109 = vmatpush1.msra.mxu0 0.0
    %110 = vmatprep.subr.mxu0 0.0
    %111 = vmatpush1.msra.mxu0 0.0
    %112 = vmatprep.subr.mxu0 0.0
    %113 = vmatpush1.msra.mxu0 0.0
    %114 = vmatprep.subr.mxu0 0.0
    %115 = vmatpush1.msra.mxu0 0.0
    %116 = vmatprep.subr.mxu0 0.0
    %117 = vmatpush1.msra.mxu0 0.0
    %118 = vmatprep.subr.mxu0 0.0
    %119 = vmatpush1.msra.mxu0 0.0
    %120 = vmatprep.subr.mxu0 0.0
    %121 = vmatpush1.msra.mxu0 0.0
    %122 = vmatprep.subr.mxu0 0.0
    %123 = vmatpush1.msra.mxu0 0.0
    %124 = vmatprep.subr.mxu0 0.0
    %125 = vmatpush1.msra.mxu0 0.0
    %126 = vmatprep.subr.mxu0 0.0
    %127 = vmatpush1.msra.mxu0 0.0
    %128 = vmatprep.subr.mxu0 0.0
    %129 = vmatpush1.msra.mxu0 0.0
    %130 = vmatprep.subr.mxu0 0.0
    %131 = vmatpush1.msra.mxu0 0.0
    %132 = vmatprep.subr.mxu0 0.0
    %133 = vmatpush1.msra.mxu0 0.0
    %134 = vmatprep.subr.mxu0 0.0
    %135 = vmatpush1.msra.mxu0 0.0
    %136 = vmatprep.subr.mxu0 0.0
    %137 = vmatpush1.msra.mxu0 0.0
    %138 = vmatprep.subr.mxu0 0.0
    %139 = vmatpush1.msra.mxu0 0.0
    %140 = vmatprep.subr.mxu0 0.0
    %141 = vmatpush1.msra.mxu0 0.0
    %142 = vmatprep.subr.mxu0 0.0
    %143 = vmatpush1.msra.mxu0 0.0
    %144 = vmatprep.subr.mxu0 0.0
    %145 = vmatpush1.msra.mxu0 0.0
    %146 = vmatprep.mubr.f32.mxu0 0.0
    %147 = vmatmul.mubr.f32.gmra.mrb[0].mxu0 %v59
    %v148 = vpop.f32.mrb[0].mxu0
    %v149 = vadd.f32 %v55, %v148
    %v150 = vpop.f32.mrb[0].mxu0
    %151 = vmatprep.mubr.f32.mxu0 0.0
    %152 = vmatmul.mubr.f32.gmra.mrb[0].mxu0 %v62
    %v153 = vpop.f32.mrb[0].mxu0
    %v154 = vadd.f32 %v55, %v153
    %v155 = vpop.f32.mrb[0].mxu0
    %156 = vmatprep.mubr.f32.mxu0 0.0
    %157 = vmatmul.mubr.f32.gmra.mrb[0].mxu0 %v65
    %v158 = vpop.f32.mrb[0].mxu0
    %v159 = vadd.f32 %v55, %v158
    %v160 = vpop.f32.mrb[0].mxu0
    %161 = vmatprep.mubr.f32.mxu0 0.0
    %162 = vmatmul.mubr.f32.gmra.mrb[0].mxu0 %v68
    %v163 = vpop.f32.mrb[0].mxu0
    %v164 = vadd.f32 %v55, %v163
    %v165 = vpop.f32.mrb[0].mxu0
    %166 = vmatprep.mubr.f32.mxu0 0.0
    %167 = vmatmul.mubr.f32.gmra.mrb[0].mxu0 %v71
    %v168 = vpop.f32.mrb[0].mxu0
    %v169 = vadd.f32 %v55, %v168
    %v170 = vpop.f32.mrb[0].mxu0
    %171 = vmatprep.mubr.f32.mxu0 0.0
    %172 = vmatmul.mubr.f32.gmra.mrb[0].mxu0 %v74
    %v173 = vpop.f32.mrb[0].mxu0
    %v174 = vadd.f32 %v55, %v173
    %v175 = vpop.f32.mrb[0].mxu0
    %176 = vmatprep.mubr.f32.mxu0 0.0
    %177 = vmatmul.mubr.f32.gmra.mrb[0].mxu0 %v77
    %v178 = vpop.f32.mrb[0].mxu0
    %v179 = vadd.f32 %v55, %v178
    %v180 = vpop.f32.mrb[0].mxu0
    %181 = vmatprep.mubr.f32.mxu0 0.0
    %182 = vmatmul.mubr.f32.gmra.mrb[0].mxu0 %v80
    %v183 = vpop.f32.mrb[0].mxu0
    %v184 = vadd.f32 %v55, %v183
    %v185 = vpop.f32.mrb[0].mxu0
    %186 = vdwg.mxu0
    %v187 = vmax.f32 %v149, 0.0
    %v188 = vmax.f32 %v154, 0.0
    %v189 = vmax.f32 %v159, 0.0
    %v190 = vmax.f32 %v164, 0.0
    %v191 = vmax.f32 %v169, 0.0
    %v192 = vmax.f32 %v174, 0.0
    %v193 = vmax.f32 %v179, 0.0
    %v194 = vmax.f32 %v184, 0.0
    %v196 = vlaneseq
    %v197 = vshrl.u32 %v196, 7
    %v198 = vsub.s32 0, %v197
    %v199 = vrot.slane %v40, %v198
    %vm201 = vcmask 523264
    %v203 = vsel %vm201, %v187, 0
    %v206 = vsel %vm201, %v188, 0
    %v209 = vsel %vm201, %v189, 0
    %v212 = vsel %vm201, %v190, 0
    %v215 = vsel %vm201, %v191, 0
    %v218 = vsel %vm201, %v192, 0
    %v221 = vsel %vm201, %v193, 0
    %v224 = vsel %vm201, %v194, 0
    %226 = vmatprep.subr.mxu0 0.0
    %227 = vmatpush1.msra.mxu0 %v32
    %228 = vmatprep.subr.mxu0 0.0
    %229 = vmatpush1.msra.mxu0 %v33
    %230 = vmatprep.subr.mxu0 0.0
    %231 = vmatpush1.msra.mxu0 %v34
    %232 = vmatprep.subr.mxu0 0.0
    %233 = vmatpush1.msra.mxu0 %v35
    %234 = vmatprep.subr.mxu0 0.0
    %235 = vmatpush1.msra.mxu0 %v36
    %236 = vmatprep.subr.mxu0 0.0
    %237 = vmatpush1.msra.mxu0 %v37
    %238 = vmatprep.subr.mxu0 0.0
    %239 = vmatpush1.msra.mxu0 %v38
    %240 = vmatprep.subr.mxu0 0.0
    %241 = vmatpush1.msra.mxu0 %v39
    %242 = vmatprep.subr.mxu0 0.0
    %243 = vmatpush1.msra.mxu0 0.0
    %244 = vmatprep.subr.mxu0 0.0
    %245 = vmatpush1.msra.mxu0 0.0
    %246 = vmatprep.subr.mxu0 0.0
    %247 = vmatpush1.msra.mxu0 0.0
    %248 = vmatprep.subr.mxu0 0.0
    %249 = vmatpush1.msra.mxu0 0.0
    %250 = vmatprep.subr.mxu0 0.0
    %251 = vmatpush1.msra.mxu0 0.0
    %252 = vmatprep.subr.mxu0 0.0
    %253 = vmatpush1.msra.mxu0 0.0
    %254 = vmatprep.subr.mxu0 0.0
    %255 = vmatpush1.msra.mxu0 0.0
    %256 = vmatprep.subr.mxu0 0.0
    %257 = vmatpush1.msra.mxu0 0.0
    %258 = vmatprep.subr.mxu0 0.0
    %259 = vmatpush1.msra.mxu0 0.0
    %260 = vmatprep.subr.mxu0 0.0
    %261 = vmatpush1.msra.mxu0 0.0
    %262 = vmatprep.subr.mxu0 0.0
    %263 = vmatpush1.msra.mxu0 0.0
    %264 = vmatprep.subr.mxu0 0.0
    %265 = vmatpush1.msra.mxu0 0.0
    %266 = vmatprep.subr.mxu0 0.0
    %267 = vmatpush1.msra.mxu0 0.0
    %268 = vmatprep.subr.mxu0 0.0
    %269 = vmatpush1.msra.mxu0 0.0
    %270 = vmatprep.subr.mxu0 0.0
    %271 = vmatpush1.msra.mxu0 0.0
    %272 = vmatprep.subr.mxu0 0.0
    %273 = vmatpush1.msra.mxu0 0.0
    %274 = vmatprep.subr.mxu0 0.0
    %275 = vmatpush1.msra.mxu0 0.0
    %276 = vmatprep.subr.mxu0 0.0
    %277 = vmatpush1.msra.mxu0 0.0
    %278 = vmatprep.subr.mxu0 0.0
    %279 = vmatpush1.msra.mxu0 0.0
    %280 = vmatprep.subr.mxu0 0.0
    %281 = vmatpush1.msra.mxu0 0.0
    %282 = vmatprep.subr.mxu0 0.0
    %283 = vmatpush1.msra.mxu0 0.0
    %284 = vmatprep.subr.mxu0 0.0
    %285 = vmatpush1.msra.mxu0 0.0
    %286 = vmatprep.subr.mxu0 0.0
    %287 = vmatpush1.msra.mxu0 0.0
    %288 = vmatprep.subr.mxu0 0.0
    %289 = vmatpush1.msra.mxu0 0.0
    %290 = vmatprep.mubr.f32.mxu0 0.0
    %291 = vmatmul.mubr.f32.gmra.mrb[0].mxu0 %v203
    %v292 = vpop.f32.mrb[0].mxu0
    %v293 = vadd.f32 %v199, %v292
    %v294 = vpop.f32.mrb[0].mxu0
    %295 = vmatprep.mubr.f32.mxu0 0.0
    %296 = vmatmul.mubr.f32.gmra.mrb[0].mxu0 %v206
    %v297 = vpop.f32.mrb[0].mxu0
    %v298 = vadd.f32 %v199, %v297
    %v299 = vpop.f32.mrb[0].mxu0
    %300 = vmatprep.mubr.f32.mxu0 0.0
    %301 = vmatmul.mubr.f32.gmra.mrb[0].mxu0 %v209
    %v302 = vpop.f32.mrb[0].mxu0
    %v303 = vadd.f32 %v199, %v302
    %v304 = vpop.f32.mrb[0].mxu0
    %305 = vmatprep.mubr.f32.mxu0 0.0
    %306 = vmatmul.mubr.f32.gmra.mrb[0].mxu0 %v212
    %v307 = vpop.f32.mrb[0].mxu0
    %v308 = vadd.f32 %v199, %v307
    %v309 = vpop.f32.mrb[0].mxu0
    %310 = vmatprep.mubr.f32.mxu0 0.0
    %311 = vmatmul.mubr.f32.gmra.mrb[0].mxu0 %v215
    %v312 = vpop.f32.mrb[0].mxu0
    %v313 = vadd.f32 %v199, %v312
    %v314 = vpop.f32.mrb[0].mxu0
    %315 = vmatprep.mubr.f32.mxu0 0.0
    %316 = vmatmul.mubr.f32.gmra.mrb[0].mxu0 %v218
    %v317 = vpop.f32.mrb[0].mxu0
    %v318 = vadd.f32 %v199, %v317
    %v319 = vpop.f32.mrb[0].mxu0
    %320 = vmatprep.mubr.f32.mxu0 0.0
    %321 = vmatmul.mubr.f32.gmra.mrb[0].mxu0 %v221
    %v322 = vpop.f32.mrb[0].mxu0
    %v323 = vadd.f32 %v199, %v322
    %v324 = vpop.f32.mrb[0].mxu0
    %325 = vmatprep.mubr.f32.mxu0 0.0
    %326 = vmatmul.mubr.f32.gmra.mrb[0].mxu0 %v224
    %v327 = vpop.f32.mrb[0].mxu0
    %v328 = vadd.f32 %v199, %v327
    %v329 = vpop.f32.mrb[0].mxu0
    %330 = vdwg.mxu0
    %v331 = vmax.f32 %v293, 0.0
    %v332 = vmax.f32 %v298, 0.0
    %v333 = vmax.f32 %v303, 0.0
    %v334 = vmax.f32 %v308, 0.0
    %v335 = vmax.f32 %v313, 0.0
    %v336 = vmax.f32 %v318, 0.0
    %v337 = vmax.f32 %v323, 0.0
    %v338 = vmax.f32 %v328, 0.0
    %340 = vset.pattern.permute.xlu0 0
    %341 = vperm.xlu0 %340, %v42
    %v342 = vpop.permute.xlu0 %341
    %v344 = vlaneseq
    %v345 = vshrl.u32 %v344, 7
    %v346 = vsub.s32 0, %v345
    %v347 = vrot.slane %v342, %v346
    %v349 = vsel %vm201, %v41, 0
    %v352 = vsel %vm201, %v331, 0
    %v355 = vsel %vm201, %v332, 0
    %v358 = vsel %vm201, %v333, 0
    %v361 = vsel %vm201, %v334, 0
    %v364 = vsel %vm201, %v335, 0
    %v367 = vsel %vm201, %v336, 0
    %v370 = vsel %vm201, %v337, 0
    %v373 = vsel %vm201, %v338, 0
    %375 = vmatprep.subr.mxu0 0.0
    %376 = vmatpush1.xpose.msra.mxu0 %v352
    %377 = vmatprep.subr.mxu0 0.0
    %378 = vmatpush1.xpose.msra.mxu0 %v355
    %379 = vmatprep.subr.mxu0 0.0
    %380 = vmatpush1.xpose.msra.mxu0 %v358
    %381 = vmatprep.subr.mxu0 0.0
    %382 = vmatpush1.xpose.msra.mxu0 %v361
    %383 = vmatprep.subr.mxu0 0.0
    %384 = vmatpush1.xpose.msra.mxu0 %v364
    %385 = vmatprep.subr.mxu0 0.0
    %386 = vmatpush1.xpose.msra.mxu0 %v367
    %387 = vmatprep.subr.mxu0 0.0
    %388 = vmatpush1.xpose.msra.mxu0 %v370
    %389 = vmatprep.subr.mxu0 0.0
    %390 = vmatpush1.xpose.msra.mxu0 %v373
    %391 = vmatprep.subr.mxu0 0.0
    %392 = vmatpush1.xpose.msra.mxu0 0.0
    %393 = vmatprep.subr.mxu0 0.0
    %394 = vmatpush1.xpose.msra.mxu0 0.0
    %395 = vmatprep.subr.mxu0 0.0
    %396 = vmatpush1.xpose.msra.mxu0 0.0
    %397 = vmatprep.subr.mxu0 0.0
    %398 = vmatpush1.xpose.msra.mxu0 0.0
    %399 = vmatprep.subr.mxu0 0.0
    %400 = vmatpush1.xpose.msra.mxu0 0.0
    %401 = vmatprep.subr.mxu0 0.0
    %402 = vmatpush1.xpose.msra.mxu0 0.0
    %403 = vmatprep.subr.mxu0 0.0
    %404 = vmatpush1.xpose.msra.mxu0 0.0
    %405 = vmatprep.subr.mxu0 0.0
    %406 = vmatpush1.xpose.msra.mxu0 0.0
    %407 = vmatprep.subr.mxu0 0.0
    %408 = vmatpush1.xpose.msra.mxu0 0.0
    %409 = vmatprep.subr.mxu0 0.0
    %410 = vmatpush1.xpose.msra.mxu0 0.0
    %411 = vmatprep.subr.mxu0 0.0
    %412 = vmatpush1.xpose.msra.mxu0 0.0
    %413 = vmatprep.subr.mxu0 0.0
    %414 = vmatpush1.xpose.msra.mxu0 0.0
    %415 = vmatprep.subr.mxu0 0.0
    %416 = vmatpush1.xpose.msra.mxu0 0.0
    %417 = vmatprep.subr.mxu0 0.0
    %418 = vmatpush1.xpose.msra.mxu0 0.0
    %419 = vmatprep.subr.mxu0 0.0
    %420 = vmatpush1.xpose.msra.mxu0 0.0
    %421 = vmatprep.subr.mxu0 0.0
    %422 = vmatpush1.xpose.msra.mxu0 0.0
    %423 = vmatprep.subr.mxu0 0.0
    %424 = vmatpush1.xpose.msra.mxu0 0.0
    %425 = vmatprep.subr.mxu0 0.0
    %426 = vmatpush1.xpose.msra.mxu0 0.0
    %427 = vmatprep.subr.mxu0 0.0
    %428 = vmatpush1.xpose.msra.mxu0 0.0
    %429 = vmatprep.subr.mxu0 0.0
    %430 = vmatpush1.xpose.msra.mxu0 0.0
    %431 = vmatprep.subr.mxu0 0.0
    %432 = vmatpush1.xpose.msra.mxu0 0.0
    %433 = vmatprep.subr.mxu0 0.0
    %434 = vmatpush1.xpose.msra.mxu0 0.0
    %435 = vmatprep.subr.mxu0 0.0
    %436 = vmatpush1.xpose.msra.mxu0 0.0
    %437 = vmatprep.subr.mxu0 0.0
    %438 = vmatpush1.xpose.msra.mxu0 0.0
    %439 = vmatprep.mubr.f32.mxu0 0.0
    %440 = vmatmul.mubr.f32.gmra.mrb[0].mxu0 %v349
    %v441 = vpop.f32.mrb[0].mxu0
    %v442 = vadd.f32 %v347, %v441
    %v443 = vpop.f32.mrb[0].mxu0
    %444 = vdwg.mxu0
    %vm445 = vcmask 516096
    %446 = vst.msk [vmem:[#allocation3] sm:$0x1] %vm445, %v442
    // Predicated region
    $region30: #{tpu_custom_call.1} parent=1 // pred_check
      _
    $region31: #{tpu_custom_call.1} parent=1 // pred_check_branch
      %448 = sbr.rel (0) target = $region33
    $region32: #{tpu_custom_call.1} parent=1 // pred_region
      %s450 = ssub.s32 16, 16
      %451 = vsyncadd [#allocation4], %s450
      %s453 = sshll.u32 [#allocation3], 4
      %s454 = int_to_ptr.vmem [resolvable:$true] %s453
      %456 = dma.vmem_to_hbm [thread:$0]  %s454, 16, %s7, [#allocation4]
    $region33: #{tpu_custom_call.1} parent=1 // pred_fallthru
      _
    // Predicated region
    $region34: #{tpu_custom_call.1} parent=1 // pred_check
      _
    $region35: #{tpu_custom_call.1} parent=1 // pred_check_branch
      %458 = sbr.rel (0) target = $region37
    $region36: #{tpu_custom_call.1} parent=1 // pred_region
      %459 = dma.done [#allocation4], 16
    $region37: #{tpu_custom_call.1} parent=1 // pred_fallthru
      _
    %460 = vsyncpa [#allocation4], 1

</llo_original>
